<compile_context>
chip_gen: v6e
topology: v6e:2x2x1
jax: 0.10.0
libtpu: 0.0.40
codegen_flags: <defaults>
</compile_context>

<pallas_src>
import math

import jax
import jax.numpy as jnp
from jax import lax
from jax.experimental import pallas as pl
from jax.experimental.pallas import tpu as pltpu

_VMEM_LIMIT = 32 * 1024 * 1024
_LN_EPS = 1e-12          # matches Block's nn.LayerNorm(..., eps=1e-12)


def _pick_tile(n, target, unit=8):
    """Largest tile that is a multiple of `unit`, divides n and is <= target.
    Falls back to the full dimension (always a legal block size)."""
    if n <= target:
        return n
    t = (target // unit) * unit
    while t >= unit:
        if n % t == 0:
            return t
        t -= unit
    return n


def _ln(x, g, b):
    mu = jnp.mean(x, axis=-1, keepdims=True)
    var = jnp.mean((x - mu) ** 2, axis=-1, keepdims=True)
    return (x - mu) * lax.rsqrt(var + _LN_EPS) * g + b


# --------------------------------------------------------------------------------------
# Linear (encoder / decoder): y = x @ W + b, tiled over rows and output columns
# --------------------------------------------------------------------------------------
def _linear_kernel(x_ref, w_ref, b_ref, o_ref):
    o_ref[...] = (jnp.dot(x_ref[...], w_ref[...], preferred_element_type=jnp.float32)
                  + b_ref[...])


def linear(x2d, w_kn, b):
    M, K = x2d.shape
    N = w_kn.shape[1]
    tm = _pick_tile(M, 512, 8)       # large row tiles (perf review #1)
    tn = _pick_tile(N, 512, 128)     # lane-dense, 128-multiple output tiles when possible
    assert M % tm == 0 and N % tn == 0
    return pl.pallas_call(
        _linear_kernel,
        out_shape=jax.ShapeDtypeStruct((M, N), jnp.float32),
        grid=(M // tm, N // tn),
        in_specs=[pl.BlockSpec((tm, K), lambda i, j: (i, 0)),
                  pl.BlockSpec((K, tn), lambda i, j: (0, j)),
                  pl.BlockSpec((1, tn), lambda i, j: (0, j))],
        out_specs=pl.BlockSpec((tm, tn), lambda i, j: (i, j)),
        compiler_params=pltpu.CompilerParams(
            dimension_semantics=("parallel", "parallel"),
            vmem_limit_bytes=_VMEM_LIMIT),
    )(x2d, w_kn, b.reshape(1, N))


# --------------------------------------------------------------------------------------
# LSTM block: fused lnstart + hoisted input projection + chunked recurrence
# --------------------------------------------------------------------------------------
def _lstm_kernel(h_ref, g_ref, be_ref, wih_ref, whh_ref, bl_ref, o_ref, h_scr, c_scr):
    # h_ref / o_ref: (tc, D) time chunk of one batch element (batch dim squeezed).
    tc, D = h_ref.shape

    @pl.when(pl.program_id(1) == 0)            # new batch element -> zero hidden state
    def _():
        h_scr[...] = jnp.zeros_like(h_scr)
        c_scr[...] = jnp.zeros_like(c_scr)

    x = _ln(h_ref[...], g_ref[...], be_ref[...])                       # fused lnstart
    # Hoisted input projection: one MXU matmul for the whole chunk.
    xg = (jnp.dot(x, wih_ref[...], preferred_element_type=jnp.float32)
          + bl_ref[...])                                               # (tc, 4D)

    h = h_scr[...]
    c = c_scr[...]
    for t in range(tc):                         # static unroll; recurrence only h @ Whh
        gates = xg[t:t + 1, :] + jnp.dot(h, whh_ref[...],
                                         preferred_element_type=jnp.float32)
        i = jax.nn.sigmoid(gates[:, 0 * D:1 * D])          # PyTorch gate order i, f, g, o
        f = jax.nn.sigmoid(gates[:, 1 * D:2 * D])
        g = jnp.tanh(gates[:, 2 * D:3 * D])
        o = jax.nn.sigmoid(gates[:, 3 * D:4 * D])
        c = f * c + i * g
        h = o * jnp.tanh(c)
        o_ref[pl.ds(t, 1), :] = h
    h_scr[...] = h
    c_scr[...] = c


def lstm_block(h, blk):
    B, L, D = h.shape
    tc = _pick_tile(L, 16, 8)                   # time chunk size
    assert L % tc == 0
    g, be = blk['lnstart']
    return pl.pallas_call(
        _lstm_kernel,
        out_shape=jax.ShapeDtypeStruct((B, L, D), jnp.float32),
        grid=(B, L // tc),
        in_specs=[pl.BlockSpec((None, tc, D), lambda b, t: (b, t, 0)),
                  pl.BlockSpec((1, D), lambda b, t: (0, 0)),
                  pl.BlockSpec((1, D), lambda b, t: (0, 0)),
                  pl.BlockSpec((D, 4 * D), lambda b, t: (0, 0)),
                  pl.BlockSpec((D, 4 * D), lambda b, t: (0, 0)),
                  pl.BlockSpec((1, 4 * D), lambda b, t: (0, 0))],
        out_specs=pl.BlockSpec((None, tc, D), lambda b, t: (b, t, 0)),
        scratch_shapes=[pltpu.VMEM((1, D), jnp.float32),
                        pltpu.VMEM((1, D), jnp.float32)],
        compiler_params=pltpu.CompilerParams(
            dimension_semantics=("parallel", "arbitrary"),
            vmem_limit_bytes=_VMEM_LIMIT),
    )(h, g.reshape(1, D), be.reshape(1, D),
      blk['wih_t'], blk['whh_t'], blk['b_lstm'].reshape(1, 4 * D))


# --------------------------------------------------------------------------------------
# Attention block: fused lnmem/lnmid + q Linear + gated scaling + softmax + residual
# --------------------------------------------------------------------------------------
def _attn_kernel(hq_ref, hk_ref, gmid_ref, bmid_ref, gmem_ref, bmem_ref,
                 wq_ref, bq_ref, qs_ref, ks_ref, vs_ref, o_ref):
    # hq_ref: (tq, D) query rows; hk_ref: (L, D) all rows of the same batch element.
    hm = _ln(hq_ref[...], gmid_ref[...], bmid_ref[...])    # lnmid(h) on query rows
    z = _ln(hk_ref[...], gmem_ref[...], bmem_ref[...])     # lnmem(h) on key/value rows
    D = hm.shape[-1]
    q = (jnp.dot(hm, wq_ref[...], preferred_element_type=jnp.float32)
         + bq_ref[...]) * qs_ref[...]
    k = z * ks_ref[...]
    v = z * vs_ref[...]
    s = lax.dot_general(q, k, (((1,), (1,)), ((), ())),
                        preferred_element_type=jnp.float32) * (1.0 / math.sqrt(D))
    m = jnp.max(s, axis=-1, keepdims=True)
    e = jnp.exp(s - m)
    w = e * pl.reciprocal(jnp.sum(e, axis=-1, keepdims=True), approx=False)
    o_ref[...] = jnp.dot(w, v, preferred_element_type=jnp.float32) + hm   # h = attn + lnmid(h)


def attention_block(h, blk, qs_sig, ks_sig, vs_eff):
    B, L, D = h.shape
    tq = _pick_tile(L, 128, 8)                  # query tile -> scores are only (tq, L)
    assert L % tq == 0
    gmid, bmid = blk['lnmid']
    gmem, bmem = blk['lnmem']
    return pl.pallas_call(
        _attn_kernel,
        out_shape=jax.ShapeDtypeStruct((B, L, D), jnp.float32),
        grid=(B, L // tq),
        in_specs=[pl.BlockSpec((None, tq, D), lambda b, i: (b, i, 0)),   # query rows of h
                  pl.BlockSpec((None, L, D), lambda b, i: (b, 0, 0)),    # key/value rows of h
                  pl.BlockSpec((1, D), lambda b, i: (0, 0)),
                  pl.BlockSpec((1, D), lambda b, i: (0, 0)),
                  pl.BlockSpec((1, D), lambda b, i: (0, 0)),
                  pl.BlockSpec((1, D), lambda b, i: (0, 0)),
                  pl.BlockSpec((D, D), lambda b, i: (0, 0)),
                  pl.BlockSpec((1, D), lambda b, i: (0, 0)),
                  pl.BlockSpec((1, D), lambda b, i: (0, 0)),
                  pl.BlockSpec((1, D), lambda b, i: (0, 0)),
                  pl.BlockSpec((1, D), lambda b, i: (0, 0))],
        out_specs=pl.BlockSpec((None, tq, D), lambda b, i: (b, i, 0)),
        compiler_params=pltpu.CompilerParams(
            dimension_semantics=("parallel", "parallel"),
            vmem_limit_bytes=_VMEM_LIMIT),
    )(h, h, gmid.reshape(1, D), bmid.reshape(1, D), gmem.reshape(1, D), bmem.reshape(1, D),
      blk['wq_t'], blk['bq'].reshape(1, D),
      qs_sig.reshape(1, D), ks_sig.reshape(1, D), vs_eff.reshape(1, D))


# --------------------------------------------------------------------------------------
# Boom block: fused lnff/lnxff + GELU(linear1) + chunk-sum + residual
# --------------------------------------------------------------------------------------
def _boom_kernel(h_ref, gff_ref, bff_ref, gxff_ref, bxff_ref, w1_ref, b1_ref, o_ref):
    x = h_ref[...]
    hf = _ln(x, gff_ref[...], bff_ref[...])                 # lnff(h)  (residual branch)
    xf = _ln(x, gxff_ref[...], bxff_ref[...])               # lnxff(h) (feed-forward input)
    u = jnp.dot(xf, w1_ref[...], preferred_element_type=jnp.float32) + b1_ref[...]
    u = u * jax.nn.sigmoid(1.702 * u)                       # GELU as defined in the module
    TM, D = x.shape
    F = u.shape[-1]
    z = hf
    for c in range(F // D):                                 # "narrow + view + sum"
        z = z + u[:, c * D:(c + 1) * D]
    o_ref[...] = z


def boom_block(h2d, blk):
    M, D = h2d.shape
    F = blk['w1_t'].shape[1]
    tm = _pick_tile(M, 256, 8)
    assert M % tm == 0
    gff, bff = blk['lnff']
    gxff, bxff = blk['lnxff']
    return pl.pallas_call(
        _boom_kernel,
        out_shape=jax.ShapeDtypeStruct((M, D), jnp.float32),
        grid=(M // tm,),
        in_specs=[pl.BlockSpec((tm, D), lambda i: (i, 0)),
                  pl.BlockSpec((1, D), lambda i: (0, 0)),
                  pl.BlockSpec((1, D), lambda i: (0, 0)),
                  pl.BlockSpec((1, D), lambda i: (0, 0)),
                  pl.BlockSpec((1, D), lambda i: (0, 0)),
                  pl.BlockSpec((D, F), lambda i: (0, 0)),
                  pl.BlockSpec((1, F), lambda i: (0, 0))],
        out_specs=pl.BlockSpec((tm, D), lambda i: (i, 0)),
        compiler_params=pltpu.CompilerParams(
            dimension_semantics=("parallel",),
            vmem_limit_bytes=_VMEM_LIMIT),
    )(h2d, gff.reshape(1, D), bff.reshape(1, D), gxff.reshape(1, D), bxff.reshape(1, D),
      blk['w1_t'], blk['b1'].reshape(1, F))


# --------------------------------------------------------------------------------------
# Parameter setup (plain-JAX glue; deterministic synthetic init)
# --------------------------------------------------------------------------------------
def init_params(key, ntoken, ninp, nhid, nlayers):
    D, F = ninp, nhid
    keys = jax.random.split(key, 2 + nlayers)

    def normal(k, shape, scale=0.1):
        return (scale * jax.random.normal(k, shape)).astype(jnp.float32)

    params = {
        'enc_w': normal(keys[0], (ntoken, D)),          # stored as (in, out) = W^T
        'enc_b': jnp.zeros((D,), jnp.float32),
        'dec_w': normal(keys[1], (D, ntoken)),
        'dec_b': jnp.zeros((ntoken,), jnp.float32),
        'blocks': [],
    }
    for l in range(nlayers):
        bk = jax.random.split(keys[2 + l], 22)

        def ln_pair(i):
            return (1.0 + normal(bk[i], (D,)), normal(bk[i + 1], (D,), 0.05))

        blk = dict(
            lnstart=ln_pair(0), lnmem=ln_pair(2), lnmid=ln_pair(4),
            lnff=ln_pair(6), lnxff=ln_pair(8),
            wih_t=normal(bk[10], (D, 4 * D)),           # LSTM weight_ih^T
            whh_t=normal(bk[11], (D, 4 * D)),           # LSTM weight_hh^T
            b_lstm=normal(bk[12], (4 * D,)),            # b_ih + b_hh combined
            qs=normal(bk[13], (1, 1, D)),
            ks=normal(bk[14], (1, 1, D)),
            vs=normal(bk[15], (1, 1, D)),
            vq_w=normal(bk[16], (D, 2 * D)),            # Overparam.l1 weight^T
            vq_b=normal(bk[17], (2 * D,)),
            wq_t=normal(bk[18], (D, D)),                # Attention.q weight^T
            bq=normal(bk[19], (D,)),
            w1_t=normal(bk[20], (D, F)),                # Boom.linear1 weight^T
            b1=normal(bk[21], (F,)),
        )
        params['blocks'].append(blk)
    return params


def attn_scales(blk):
    # sigmoid gates on the (1,1,D) parameters; vs goes through Overparam (tiny, glue).
    D = blk['qs'].shape[-1]
    qs_sig = jax.nn.sigmoid(blk['qs'])
    ks_sig = jax.nn.sigmoid(blk['ks'])
    vs_sig = jax.nn.sigmoid(blk['vs'])
    cf = jnp.einsum('abd,de->abe', vs_sig, blk['vq_w']) + blk['vq_b']
    c, f = cf[..., :D], cf[..., D:]
    vs_eff = jax.nn.sigmoid(f) * jnp.tanh(c)
    return qs_sig, ks_sig, vs_eff


# --------------------------------------------------------------------------------------
# Model forward (Pallas kernels for all matmul / LSTM / attention / FF / LN compute)
# --------------------------------------------------------------------------------------
def block_forward(h, blk):
    B, L, D = h.shape
    # LSTM sub-block (lnstart fused; residual=False -> h becomes the LSTM output).
    h = lstm_block(h, blk)
    # Attention sub-block (lnmem/lnmid fused; h = attn(lnmid(h), lnmem(h), lnmem(h)) + lnmid(h)).
    qs_sig, ks_sig, vs_eff = attn_scales(blk)
    h = attention_block(h, blk, qs_sig, ks_sig, vs_eff)
    # Boom feed-forward sub-block (lnff/lnxff fused; h = ff(lnxff(h)) + lnff(h)).
    h = boom_block(h.reshape(B * L, D), blk).reshape(B, L, D)
    return h


def sharnn_forward(x, params):
    # layout: x is (batch, ntoken, seq); output is (batch, ntoken, seq).
    B, T, L = x.shape
    D = params['enc_w'].shape[1]
    h = linear(jnp.transpose(x, (0, 2, 1)).reshape(B * L, T),
               params['enc_w'], params['enc_b']).reshape(B, L, D)
    for blk in params['blocks']:
        h = block_forward(h, blk)
    out = linear(h.reshape(B * L, D), params['dec_w'], params['dec_b'])
    return jnp.transpose(out.reshape(B, L, T), (0, 2, 1))


# --------------------------------------------------------------------------------------
# Pure-JAX reference (same math, no Pallas) for the correctness check
# --------------------------------------------------------------------------------------
def ref_forward(x, params):
    def ln(v, g, b):
        m = jnp.mean(v, -1, keepdims=True)
        var = jnp.mean((v - m) ** 2, -1, keepdims=True)
        return (v - m) * lax.rsqrt(var + _LN_EPS) * g + b

    def gelu(v):
        return v * jax.nn.sigmoid(1.702 * v)

    B, T, L = x.shape
    D = params['enc_w'].shape[1]
    h = jnp.transpose(x, (0, 2, 1)) @ params['enc_w'] + params['enc_b']
    for blk in params['blocks']:
        h = ln(h, *blk['lnstart'])

        def step(carry, x_t):
            hh, cc = carry
            gates = x_t @ blk['wih_t'] + hh @ blk['whh_t'] + blk['b_lstm']
            i, f, g, o = jnp.split(gates, 4, axis=-1)
            i, f, o = jax.nn.sigmoid(i), jax.nn.sigmoid(f), jax.nn.sigmoid(o)
            g = jnp.tanh(g)
            cc = f * cc + i * g
            hh = o * jnp.tanh(cc)
            return (hh, cc), hh

        init = (jnp.zeros((B, D), jnp.float32), jnp.zeros((B, D), jnp.float32))
        _, ys = lax.scan(step, init, jnp.transpose(h, (1, 0, 2)))
        h = jnp.transpose(ys, (1, 0, 2))

        z = ln(h, *blk['lnmem'])
        hm = ln(h, *blk['lnmid'])
        qs_sig, ks_sig, vs_eff = attn_scales(blk)
        q = qs_sig * (hm @ blk['wq_t'] + blk['bq'])
        k = ks_sig * z
        v = vs_eff * z
        scores = jnp.einsum('bqd,bkd->bqk', q, k) / math.sqrt(D)
        w = jax.nn.softmax(scores, axis=-1)
        h = jnp.einsum('bqk,bkd->bqd', w, v) + hm

        hf = ln(h, *blk['lnff'])
        xf = ln(h, *blk['lnxff'])
        u = gelu(xf @ blk['w1_t'] + blk['b1'])
        F = u.shape[-1]
        nchunks = F // D
        u = u[..., :nchunks * D].reshape(*u.shape[:-1], nchunks, D)
        h = u.sum(-2) + hf
    out = h @ params['dec_w'] + params['dec_b']
    return jnp.transpose(out, (0, 2, 1))


if __name__ == "__main__":
    B, L = 2, 8                      # batch, sequence length
    ntoken, ninp, nhid, nlayers = 16, 32, 64, 2
    key = jax.random.PRNGKey(0)
    kx, kp = jax.random.split(key)
    x = jax.random.normal(kx, (B, ntoken, L), dtype=jnp.float32)
    params = init_params(kp, ntoken, ninp, nhid, nlayers)

    out = jax.block_until_ready(sharnn_forward(x, params))
    ref = jax.block_until_ready(ref_forward(x, params))

    assert out.shape == (B, ntoken, L), out.shape
    max_err = float(jnp.max(jnp.abs(out - ref)))
    assert jnp.allclose(out, ref, atol=1e-3, rtol=1e-3), f"max_err={max_err}"
    print("KERNEL_OK")
</pallas_src>

<mosaic_0001>
module attributes {stable_mosaic.version = 11 : i64} {
  func.func @_linear_kernel(%arg0: i32, %arg1: i32, %arg2: memref<16x16xf32, #tpu.memory_space<vmem>>, %arg3: memref<16x32xf32, #tpu.memory_space<vmem>>, %arg4: memref<1x32xf32, #tpu.memory_space<vmem>>, %arg5: memref<16x32xf32, #tpu.memory_space<vmem>>) attributes {dimension_semantics = [#tpu.dimension_semantics<parallel>, #tpu.dimension_semantics<parallel>], iteration_bounds = array<i64: 1, 1>, scalar_prefetch = 0 : i64, scratch_operands = 0 : i64, tpu.core_type = #tpu.core_type<tc>, window_params = [{transform_indices = @transform_0, window_bounds = array<i64: 16, 16>}, {transform_indices = @transform_1, window_bounds = array<i64: 16, 32>}, {transform_indices = @transform_2, window_bounds = array<i64: 1, 32>}, {transform_indices = @transform_3, window_bounds = array<i64: 16, 32>}]} {
    %c0 = arith.constant 0 : index
    %c0_0 = arith.constant 0 : index
    %0 = vector.load %arg2[%c0, %c0_0] : memref<16x16xf32, #tpu.memory_space<vmem>>, vector<16x16xf32>
    %c0_1 = arith.constant 0 : index
    %c0_2 = arith.constant 0 : index
    %1 = vector.load %arg3[%c0_1, %c0_2] : memref<16x32xf32, #tpu.memory_space<vmem>>, vector<16x32xf32>
    %cst = arith.constant dense<0.000000e+00> : vector<16x32xf32>
    %2 = tpu.matmul %0, %1, %cst {dimension_numbers = #tpu.dot_dimension_numbers<[1], [0], [0], [1], [0, 0, 1, 1], [], []>} : vector<16x16xf32>, vector<16x32xf32>, vector<16x32xf32> -> vector<16x32xf32>
    %c0_3 = arith.constant 0 : index
    %c0_4 = arith.constant 0 : index
    %3 = vector.load %arg4[%c0_3, %c0_4] : memref<1x32xf32, #tpu.memory_space<vmem>>, vector<1x32xf32>
    %4 = vector.broadcast %3 : vector<1x32xf32> to vector<16x32xf32>
    %5 = arith.addf %2, %4 : vector<16x32xf32>
    %c0_5 = arith.constant 0 : index
    %c0_6 = arith.constant 0 : index
    %6 = vector.load %arg5[%c0_5, %c0_6] : memref<16x32xf32, #tpu.memory_space<vmem>>, vector<16x32xf32>
    tpu.vector_store %arg5[%c0_5, %c0_6], %5 {strides = array<i32>} : memref<16x32xf32, #tpu.memory_space<vmem>>, vector<16x32xf32>,
    return
  }
  func.func @transform_0(%arg0: i32, %arg1: i32) -> (i32, i32) {
    %c0_i32 = arith.constant 0 : i32
    %c0_i32_0 = arith.constant 0 : i32
    return %arg0, %c0_i32 : i32, i32
  }
  func.func @transform_1(%arg0: i32, %arg1: i32) -> (i32, i32) {
    %c0_i32 = arith.constant 0 : i32
    %c0_i32_0 = arith.constant 0 : i32
    return %c0_i32, %arg1 : i32, i32
  }
  func.func @transform_2(%arg0: i32, %arg1: i32) -> (i32, i32) {
    %c0_i32 = arith.constant 0 : i32
    %c0_i32_0 = arith.constant 0 : i32
    return %c0_i32, %arg1 : i32, i32
  }
  func.func @transform_3(%arg0: i32, %arg1: i32) -> (i32, i32) {
    %c0_i32 = arith.constant 0 : i32
    return %arg0, %arg1 : i32, i32
  }
}

</mosaic_0001>

<llo_original>
// kernel: tpu_custom_call.1
$region0: #{tpu_custom_call.1}
  #allocation0 [shape = 'u32[]', space=smem, size = 0x4, offset = 0x4, fixed_abs, tag = 'smem constant byte address 0x4 - core index']
  #allocation1 [shape = 'u32[144,128]{1,0:T(1,128)}', space=vmem, size = 0x12000, scoped, tag = 'internal scratch']
  %s0 = inlined_call_operand.hbm [shape: f32[16,16], index: 0, kind: input, shape index: {}]
  %s1 = inlined_call_operand.hbm [shape: f32[16,32], index: 1, kind: input, shape index: {}]
  %s2 = inlined_call_operand.vmem [shape: f32[1,32], index: 2, kind: input, shape index: {}]
  %s3 = inlined_call_operand.hbm [shape: f32[16,32], index: 3, kind: output, shape index: {}]
  %s4 = sld [smem:[#allocation0]]
  $region30: #{tpu_custom_call.1} parent=0
    _
  %s6 = ssub.s32 1, %s4
  %s7 = scalar_select 0, %s6, %s4
  $region1: #{tpu_custom_call.1} parent=0
    #allocation2 [shape = 'u8[8192]{0}', space=vmem, size = 0x2000, scoped, tag = 'input window, operand 0, single buffered']
    #allocation3 [shape = 's32[1]{0}', space=sflag, size = 0x4, scoped, tag = 'scoped memory for tpu_custom_call.1']
    #allocation4 [shape = 's32[1]{0}', space=sflag, size = 0x4, scoped, tag = 'scoped memory for tpu_custom_call.1']
    #allocation5 [shape = 'u8[8192]{0}', space=vmem, size = 0x2000, scoped, tag = 'input window, operand 1, single buffered']
    #allocation6 [shape = 's32[1]{0}', space=sflag, size = 0x4, scoped, tag = 'scoped memory for tpu_custom_call.1']
    #allocation7 [shape = 'u8[8192]{0}', space=vmem, size = 0x2000, scoped, tag = 'output window, operand 0, single buffered']
    %8 = vsyncpa [#allocation3], 0
    %9 = vsyncpa [#allocation6], 0
    %10 = vsyncpa [#allocation4], 0
    // Predicated region
    $region2: #{tpu_custom_call.1} parent=1 // pred_check
      _
    $region3: #{tpu_custom_call.1} parent=1 // pred_check_branch
      %12 = sbr.rel (0) target = $region5
    $region4: #{tpu_custom_call.1} parent=1 // pred_region
      %s14 = ssub.s32 256, 256
      %15 = vsyncadd [#allocation3], %s14
      %s16 = sshll.u32 [#allocation2], 4
      %s17 = int_to_ptr.vmem [resolvable:$true] %s16
      %22 = dma.hbm_to_vmem [thread:$0]  %s0, 256, %s17, [#allocation3], 128, 128, 8
    $region5: #{tpu_custom_call.1} parent=1 // pred_fallthru
      _
    // Predicated region
    $region6: #{tpu_custom_call.1} parent=1 // pred_check
      _
    $region7: #{tpu_custom_call.1} parent=1 // pred_check_branch
      %24 = sbr.rel (0) target = $region9
    $region8: #{tpu_custom_call.1} parent=1 // pred_region
      %s26 = ssub.s32 256, 256
      %27 = vsyncadd [#allocation6], %s26
      %s28 = sshll.u32 [#allocation5], 4
      %s29 = int_to_ptr.vmem [resolvable:$true] %s28
      %34 = dma.hbm_to_vmem [thread:$0]  %s1, 256, %s29, [#allocation6], 128, 128, 8
    $region9: #{tpu_custom_call.1} parent=1 // pred_fallthru
      _
    // Predicated region
    $region10: #{tpu_custom_call.1} parent=1 // pred_check
      _
    $region11: #{tpu_custom_call.1} parent=1 // pred_check_branch
      %36 = sbr.rel (0) target = $region13
    $region12: #{tpu_custom_call.1} parent=1 // pred_region
      _
    $region13: #{tpu_custom_call.1} parent=1 // pred_fallthru
      _
    // Predicated region
    $region14: #{tpu_custom_call.1} parent=1 // pred_check
      _
    $region15: #{tpu_custom_call.1} parent=1 // pred_check_branch
      %38 = sbr.rel (0) target = $region17
    $region16: #{tpu_custom_call.1} parent=1 // pred_region
      %39 = dma.done [#allocation3], 256
    $region17: #{tpu_custom_call.1} parent=1 // pred_fallthru
      _
    // Predicated region
    $region18: #{tpu_custom_call.1} parent=1 // pred_check
      _
    $region19: #{tpu_custom_call.1} parent=1 // pred_check_branch
      %41 = sbr.rel (0) target = $region21
    $region20: #{tpu_custom_call.1} parent=1 // pred_region
      %42 = dma.done [#allocation6], 256
    $region21: #{tpu_custom_call.1} parent=1 // pred_fallthru
      _
    %v43 = vld [vmem:[#allocation2] sm:$0xff]
    %v44 = vld [vmem:[#allocation2 + $0x8] sm:$0xff]
    %v45 = vld [vmem:[#allocation5] sm:$0xff]
    %v46 = vld [vmem:[#allocation5 + $0x8] sm:$0xff]
    %v47 = vld [vmem:[%s2] sm:$0x1]
    %v49 = vlaneseq
    %v50 = vshrl.u32 %v49, 7
    %v51 = vsub.s32 0, %v50
    %v52 = vrot.slane %v47, %v51
    %vm54 = vcmask 130048
    %v56 = vsel %vm54, %v43, 0
    %v59 = vsel %vm54, %v44, 0
    %61 = vmatprep.subr.mxu0 0.0
    %62 = vmatpush1.msra.mxu0 0.0
    %63 = vmatprep.subr.mxu0 0.0
    %64 = vmatpush1.msra.mxu0 0.0
    %65 = vmatprep.subr.mxu0 0.0
    %66 = vmatpush1.msra.mxu0 0.0
    %67 = vmatprep.subr.mxu0 0.0
    %68 = vmatpush1.msra.mxu0 0.0
    %69 = vmatprep.subr.mxu0 0.0
    %70 = vmatpush1.msra.mxu0 0.0
    %71 = vmatprep.subr.mxu0 0.0
    %72 = vmatpush1.msra.mxu0 0.0
    %73 = vmatprep.subr.mxu0 0.0
    %74 = vmatpush1.msra.mxu0 0.0
    %75 = vmatprep.subr.mxu0 0.0
    %76 = vmatpush1.msra.mxu0 0.0
    %77 = vmatprep.subr.mxu0 0.0
    %78 = vmatpush1.msra.mxu0 0.0
    %79 = vmatprep.subr.mxu0 0.0
    %80 = vmatpush1.msra.mxu0 0.0
    %81 = vmatprep.subr.mxu0 0.0
    %82 = vmatpush1.msra.mxu0 0.0
    %83 = vmatprep.subr.mxu0 0.0
    %84 = vmatpush1.msra.mxu0 0.0
    %85 = vmatprep.subr.mxu0 0.0
    %86 = vmatpush1.msra.mxu0 0.0
    %87 = vmatprep.subr.mxu0 0.0
    %88 = vmatpush1.msra.mxu0 0.0
    %89 = vmatprep.subr.mxu0 0.0
    %90 = vmatpush1.msra.mxu0 %v46
    %91 = vmatprep.subr.mxu0 0.0
    %92 = vmatpush1.msra.mxu0 %v45
    %93 = vmatprep.subr.mxu0 0.0
    %94 = vmatpush2.msra.mxu0 0.0
    %95 = vmatprep.subr.mxu0 0.0
    %96 = vmatpush2.msra.mxu0 0.0
    %97 = vmatprep.subr.mxu0 0.0
    %98 = vmatpush2.msra.mxu0 0.0
    %99 = vmatprep.subr.mxu0 0.0
    %100 = vmatpush2.msra.mxu0 0.0
    %101 = vmatprep.subr.mxu0 0.0
    %102 = vmatpush2.msra.mxu0 0.0
    %103 = vmatprep.subr.mxu0 0.0
    %104 = vmatpush2.msra.mxu0 0.0
    %105 = vmatprep.subr.mxu0 0.0
    %106 = vmatpush2.msra.mxu0 0.0
    %107 = vmatprep.subr.mxu0 0.0
    %108 = vmatpush2.msra.mxu0 0.0
    %109 = vmatprep.subr.mxu0 0.0
    %110 = vmatpush2.msra.mxu0 0.0
    %111 = vmatprep.subr.mxu0 0.0
    %112 = vmatpush2.msra.mxu0 0.0
    %113 = vmatprep.subr.mxu0 0.0
    %114 = vmatpush2.msra.mxu0 0.0
    %115 = vmatprep.subr.mxu0 0.0
    %116 = vmatpush2.msra.mxu0 0.0
    %117 = vmatprep.subr.mxu0 0.0
    %118 = vmatpush2.msra.mxu0 0.0
    %119 = vmatprep.subr.mxu0 0.0
    %120 = vmatpush2.msra.mxu0 0.0
    %121 = vmatprep.subr.mxu0 0.0
    %122 = vmatpush2.msra.mxu0 0.0
    %123 = vmatprep.subr.mxu0 0.0
    %124 = vmatpush2.msra.mxu0 0.0
    %125 = vmatprep.mubr.f32.mxu0 0.0
    %126 = vmatmul.mubr.f32.gmra.mxu0 %v56
    %v127 = vpop.f32.mrf.mxu0
    %v128 = vadd.f32 %v52, %v127
    %v129 = vpop.f32.mrf.mxu0
    %130 = vmatprep.mubr.f32.mxu0 0.0
    %131 = vmatmul.mubr.f32.gmra.mxu0 %v59
    %v132 = vpop.f32.mrf.mxu0
    %v133 = vadd.f32 %v52, %v132
    %v134 = vpop.f32.mrf.mxu0
    %135 = vdwg.mxu0
    %vm136 = vcmask 261120
    %137 = vst.msk [vmem:[#allocation7] sm:$0xff] %vm136, %v128
    %138 = vst.msk [vmem:[#allocation7 + $0x8] sm:$0xff] %vm136, %v133
    // Predicated region
    $region22: #{tpu_custom_call.1} parent=1 // pred_check
      _
    $region23: #{tpu_custom_call.1} parent=1 // pred_check_branch
      %140 = sbr.rel (0) target = $region25
    $region24: #{tpu_custom_call.1} parent=1 // pred_region
      %s142 = ssub.s32 256, 256
      %143 = vsyncadd [#allocation4], %s142
      %s144 = sshll.u32 [#allocation7], 4
      %s145 = int_to_ptr.vmem [resolvable:$true] %s144
      %150 = dma.vmem_to_hbm [thread:$0]  %s145, 256, %s3, [#allocation4], 128, 128, 8
    $region25: #{tpu_custom_call.1} parent=1 // pred_fallthru
      _
    // Predicated region
    $region26: #{tpu_custom_call.1} parent=1 // pred_check
      _
    $region27: #{tpu_custom_call.1} parent=1 // pred_check_branch
      %152 = sbr.rel (0) target = $region29
    $region28: #{tpu_custom_call.1} parent=1 // pred_region
      %153 = dma.done [#allocation4], 256
    $region29: #{tpu_custom_call.1} parent=1 // pred_fallthru
      _
    %154 = vsyncpa [#allocation3], 1
    %155 = vsyncpa [#allocation6], 1
    %156 = vsyncpa [#allocation4], 1

</llo_original>
